<compile_context>
chip_gen: v7x
topology: tpu7x:2x2x1
jax: 0.10.0
libtpu: 0.0.40
codegen_flags: <defaults>
</compile_context>

<pallas_src>
import functools

import jax
import jax.numpy as jnp
from jax.experimental import pallas as pl
from jax.experimental.pallas import tpu as pltpu


# ----------------------------- Pallas kernel -------------------------------

def vtst_kernel(x_ref, wenc_ref, benc_ref, wdec_ref, bdec_ref, eps_ref,
                pyz_ref, mu_ref, lv_ref, z_ref, *, latent_dim):
    x = x_ref[...]                                                     # (TB, F) bf16

    # Fused encoder head: [mu | logvar] = x @ [W_mu | W_lv] + [b_mu | b_lv]  (one MXU pass).
    enc = jnp.dot(x, wenc_ref[...],
                  preferred_element_type=jnp.float32) + benc_ref[...]  # (TB, 2L) f32

    # L is a multiple of 128 (asserted in the wrapper) so this split is on a lane boundary
    # and costs no relayout.
    mu = enc[:, :latent_dim]                                           # (TB, L) f32
    lv = enc[:, latent_dim:]                                           # (TB, L) f32

    # Reparameterize: z = eps * exp(0.5 * logvar) + mu   (EUP exp, VPU fma), f32.
    std = jnp.exp(0.5 * lv)
    z = eps_ref[...].astype(jnp.float32) * std + mu                    # (TB, L) f32

    # Label decoder (lane-dense, padded to 128 output lanes): logits = z @ W_dec + b_dec.
    pyz = jnp.dot(z.astype(wdec_ref.dtype), wdec_ref[...],
                  preferred_element_type=jnp.float32) + bdec_ref[...]  # (TB, C_pad) f32

    mu_ref[...] = mu.astype(mu_ref.dtype)
    lv_ref[...] = lv.astype(lv_ref.dtype)
    z_ref[...] = z.astype(z_ref.dtype)
    pyz_ref[...] = pyz


# --------------------------- one-time param packing --------------------------

def pack_params(params, *, compute_dtype=jnp.bfloat16):
    """Pack raw linear params into the kernel layout. Call ONCE at init, not per forward.

    Packing = concat(mu|logvar) encoder weights, zero-pad decoder to 128 output lanes,
    cast matmul operands to bf16 (biases stay f32; matmuls accumulate in f32).
    """
    L = params["w_mu"].shape[1]
    C = params["w_dec"].shape[1]
    C_pad = max(128, pl.cdiv(C, 128) * 128)

    w_enc = jnp.concatenate([params["w_mu"], params["w_lv"]], axis=1).astype(compute_dtype)
    b_enc = jnp.concatenate([params["b_mu"], params["b_lv"]], axis=1).astype(jnp.float32)
    w_dec = jnp.zeros((L, C_pad), compute_dtype).at[:, :C].set(
        params["w_dec"].astype(compute_dtype))
    b_dec = jnp.zeros((1, C_pad), jnp.float32).at[:, :C].set(
        params["b_dec"].astype(jnp.float32))

    return dict(w_enc=w_enc, b_enc=b_enc, w_dec=w_dec, b_dec=b_dec,
                latent_dim=L, num_classes=C)


# ------------------------------- batch tiling --------------------------------

def _choose_batch_tile(B):
    """Pick a batch tile that keeps the grid small.

    Per-grid-step overhead (~0.35 us) dominates this ~40 MFLOP kernel, so we want at most a
    handful of steps:
      * B <= 128         -> one tile (single grid step; best on 1-TC v5e/v6e for tiny B).
      * 128 < B <= 2048  -> exactly two tiles: with dimension_semantics=('parallel',) the two
                            tiles map one-per-TensorCore on v7x with zero pipeline bubbles,
                            while each tile keeps M >= 128 (>=256 once B >= 512, filling the
                            256-wide MXU on v6e/v7x).
      * B > 2048         -> 1024-row tiles (per-tile VMEM footprint with double buffering is
                            still only a few MiB, far under every generation's VMEM).
    """
    if B <= 128:
        return max(8, pl.cdiv(B, 8) * 8)           # single, sublane-aligned tile
    if B <= 2048:
        return pl.cdiv(pl.cdiv(B, 2), 8) * 8       # two tiles (one per TC on v7x)
    return 1024


# ------------------------------ forward wrapper -------------------------------

def vtst_forward(x, packed, eps, *, batch_tile=None, latent_dtype=jnp.float32):
    """Fused VTST forward. Returns (pyz, z_mean, z_logvar, z) with pyz shape (B, C).

    `packed` must come from pack_params() (done once at init). `latent_dtype=jnp.bfloat16`
    halves the writeback bytes of the three latent outputs if downstream tolerates it.
    """
    B, F = x.shape
    L = packed["latent_dim"]
    C = packed["num_classes"]
    C_pad = packed["w_dec"].shape[1]

    # Lane-alignment guard: mu/logvar split of the fused (TB, 2L) tile and the (TB, L)
    # output blocks are only free if L is a multiple of 128.
    assert L % 128 == 0, f"latent_dim must be a multiple of 128, got {L}"

    TB = batch_tile if batch_tile is not None else _choose_batch_tile(B)
    n_tiles = pl.cdiv(B, TB)
    B_pad = n_tiles * TB
    if B_pad != B:
        # TODO(synk): ragged-batch path still uses jnp.pad; a masked tail tile would avoid
        # this extra HBM copy. Padded rows flow through exp() (finite) and are sliced off.
        x = jnp.pad(x, ((0, B_pad - B), (0, 0)))
        eps = jnp.pad(eps, ((0, B_pad - B), (0, 0)))

    # bf16 activations / noise halve the input DMA bytes; matmuls accumulate in f32.
    # (No-op if the caller already supplies bf16, which is the recommended path.)
    if x.dtype != jnp.bfloat16:
        x = x.astype(jnp.bfloat16)
    if eps.dtype != jnp.bfloat16:
        eps = eps.astype(jnp.bfloat16)

    batched = lambda shape: pl.BlockSpec(shape, lambda i: (i, 0))
    resident = lambda shape: pl.BlockSpec(shape, lambda i: (0, 0))   # DMA'd once, stays in VMEM

    out_shapes = (
        jax.ShapeDtypeStruct((B_pad, C_pad), jnp.float32),   # pyz (lane-padded)
        jax.ShapeDtypeStruct((B_pad, L), latent_dtype),      # z_mean
        jax.ShapeDtypeStruct((B_pad, L), latent_dtype),      # z_logvar
        jax.ShapeDtypeStruct((B_pad, L), latent_dtype),      # z
    )

    pyz, mu, lv, z = pl.pallas_call(
        functools.partial(vtst_kernel, latent_dim=L),
        out_shape=out_shapes,
        grid=(n_tiles,),
        in_specs=[
            batched((TB, F)),          # x
            resident((F, 2 * L)),      # fused encoder weight
            resident((1, 2 * L)),      # fused encoder bias
            resident((L, C_pad)),      # decoder weight (padded)
            resident((1, C_pad)),      # decoder bias (padded)
            batched((TB, L)),          # eps (bf16)
        ],
        out_specs=(
            batched((TB, C_pad)),
            batched((TB, L)),
            batched((TB, L)),
            batched((TB, L)),
        ),
        compiler_params=pltpu.CompilerParams(
            dimension_semantics=("parallel",),   # batch tiles shard across v7x's 2 TCs
        ),
    )(x, packed["w_enc"], packed["b_enc"], packed["w_dec"], packed["b_dec"], eps)

    # Slice back to logical shapes only where actually needed: decoder lanes [C:] are zero
    # columns and are always dropped; the batch is only sliced if it was padded.
    if B_pad != B:
        return pyz[:B, :C], mu[:B], lv[:B], z[:B]
    return pyz[:, :C], mu, lv, z


# ------------------------- deterministic param init -------------------------

def init_params(key, feat_dim, latent_dim, num_classes):
    ks = jax.random.split(key, 6)

    def linear(kw, kb, fan_in, fan_out):
        bound = 1.0 / jnp.sqrt(fan_in)
        w = jax.random.uniform(kw, (fan_in, fan_out), jnp.float32, -bound, bound)
        b = jax.random.uniform(kb, (1, fan_out), jnp.float32, -bound, bound)
        return w, b

    w_mu, b_mu = linear(ks[0], ks[1], feat_dim, latent_dim)
    w_lv, b_lv = linear(ks[2], ks[3], feat_dim, latent_dim)
    w_dec, b_dec = linear(ks[4], ks[5], latent_dim, num_classes)
    return dict(w_mu=w_mu, b_mu=b_mu, w_lv=w_lv, b_lv=b_lv,
                w_dec=w_dec, b_dec=b_dec)


# --------------------------------- main -------------------------------------

if __name__ == "__main__":
    # batch, feature dim, latent_dim, num_classes (B=256 -> grid (2,), one tile per TC on v7x)
    B, F, L, C = 256, 256, 128, 10

    key = jax.random.PRNGKey(0)
    k_x, k_p, k_eps = jax.random.split(key, 3)

    x_f32 = jax.random.normal(k_x, (B, F), jnp.float32)
    eps_f32 = jax.random.normal(k_eps, (B, L), jnp.float32)   # randn_like(std)
    raw_params = init_params(k_p, F, L, C)

    # One-time prep outside the hot path: pack/cast weights, cast activations/noise to bf16.
    packed = pack_params(raw_params)
    x = x_f32.astype(jnp.bfloat16)
    eps = eps_f32.astype(jnp.bfloat16)

    pyz, z_mean, z_logvar, z = jax.block_until_ready(vtst_forward(x, packed, eps))

    # Pure-JAX reference mirroring the kernel's bf16 matmul / f32-accumulate math.
    enc_r = jnp.dot(x, packed["w_enc"], preferred_element_type=jnp.float32) + packed["b_enc"]
    mu_r, lv_r = enc_r[:, :L], enc_r[:, L:]
    z_r = eps.astype(jnp.float32) * jnp.exp(0.5 * lv_r) + mu_r
    pyz_r = (jnp.dot(z_r.astype(jnp.bfloat16), packed["w_dec"],
                     preferred_element_type=jnp.float32) + packed["b_dec"])[:, :C]

    assert pyz.shape == (B, C)
    assert z_mean.shape == (B, L) and z_logvar.shape == (B, L) and z.shape == (B, L)
    assert jnp.allclose(z_mean, mu_r, atol=1e-2, rtol=1e-2), "z_mean mismatch"
    assert jnp.allclose(z_logvar, lv_r, atol=1e-2, rtol=1e-2), "z_logvar mismatch"
    assert jnp.allclose(z, z_r, atol=1e-2, rtol=1e-2), "z mismatch"
    assert jnp.allclose(pyz, pyz_r, atol=5e-2, rtol=5e-2), "pyz mismatch"

    print("KERNEL_OK")
</pallas_src>

<mosaic_0001>
module attributes {stable_mosaic.version = 11 : i64} {
  func.func @vtst_kernel(%arg0: i32, %arg1: memref<128x256xbf16, #tpu.memory_space<vmem>>, %arg2: memref<256x256xbf16, #tpu.memory_space<vmem>>, %arg3: memref<1x256xf32, #tpu.memory_space<vmem>>, %arg4: memref<128x128xbf16, #tpu.memory_space<vmem>>, %arg5: memref<1x128xf32, #tpu.memory_space<vmem>>, %arg6: memref<128x128xbf16, #tpu.memory_space<vmem>>, %arg7: memref<128x128xf32, #tpu.memory_space<vmem>>, %arg8: memref<128x128xf32, #tpu.memory_space<vmem>>, %arg9: memref<128x128xf32, #tpu.memory_space<vmem>>, %arg10: memref<128x128xf32, #tpu.memory_space<vmem>>) attributes {dimension_semantics = [#tpu.dimension_semantics<parallel>], iteration_bounds = array<i64: 2>, scalar_prefetch = 0 : i64, scratch_operands = 0 : i64, tpu.core_type = #tpu.core_type<tc>, window_params = [{transform_indices = @transform_0, window_bounds = array<i64: 128, 256>}, {pipeline_mode = #tpu.pipeline_mode<synchronous>, transform_indices = @transform_1, window_bounds = array<i64: 256, 256>}, {pipeline_mode = #tpu.pipeline_mode<synchronous>, transform_indices = @transform_2, window_bounds = array<i64: 1, 256>}, {pipeline_mode = #tpu.pipeline_mode<synchronous>, transform_indices = @transform_3, window_bounds = array<i64: 128, 128>}, {pipeline_mode = #tpu.pipeline_mode<synchronous>, transform_indices = @transform_4, window_bounds = array<i64: 1, 128>}, {transform_indices = @transform_5, window_bounds = array<i64: 128, 128>}, {transform_indices = @transform_6, window_bounds = array<i64: 128, 128>}, {transform_indices = @transform_7, window_bounds = array<i64: 128, 128>}, {transform_indices = @transform_8, window_bounds = array<i64: 128, 128>}, {transform_indices = @transform_9, window_bounds = array<i64: 128, 128>}]} {
    %c0 = arith.constant 0 : index
    %c0_0 = arith.constant 0 : index
    %0 = vector.load %arg1[%c0, %c0_0] : memref<128x256xbf16, #tpu.memory_space<vmem>>, vector<128x256xbf16>
    %c0_1 = arith.constant 0 : index
    %c0_2 = arith.constant 0 : index
    %1 = vector.load %arg2[%c0_1, %c0_2] : memref<256x256xbf16, #tpu.memory_space<vmem>>, vector<256x256xbf16>
    %cst = arith.constant dense<0.000000e+00> : vector<128x256xf32>
    %2 = tpu.matmul %0, %1, %cst {dimension_numbers = #tpu.dot_dimension_numbers<[1], [0], [0], [1], [0, 0, 1, 1], [], []>} : vector<128x256xbf16>, vector<256x256xbf16>, vector<128x256xf32> -> vector<128x256xf32>
    %c0_3 = arith.constant 0 : index
    %c0_4 = arith.constant 0 : index
    %3 = vector.load %arg3[%c0_3, %c0_4] : memref<1x256xf32, #tpu.memory_space<vmem>>, vector<1x256xf32>
    %4 = vector.broadcast %3 : vector<1x256xf32> to vector<128x256xf32>
    %5 = arith.addf %2, %4 : vector<128x256xf32>
    %6 = vector.extract_strided_slice %5 {offsets = [0, 0], sizes = [128, 128], strides = [1, 1]} : vector<128x256xf32> to vector<128x128xf32>
    %7 = vector.extract_strided_slice %5 {offsets = [0, 128], sizes = [128, 128], strides = [1, 1]} : vector<128x256xf32> to vector<128x128xf32>
    %cst_5 = arith.constant 5.000000e-01 : f32
    %8 = vector.broadcast %cst_5 : f32 to vector<128x128xf32>
    %9 = arith.mulf %8, %7 : vector<128x128xf32>
    %10 = math.exp %9 : vector<128x128xf32>
    %c0_6 = arith.constant 0 : index
    %c0_7 = arith.constant 0 : index
    %11 = vector.load %arg6[%c0_6, %c0_7] : memref<128x128xbf16, #tpu.memory_space<vmem>>, vector<128x128xbf16>
    %12 = arith.extf %11 : vector<128x128xbf16> to vector<128x128xf32>
    %13 = arith.mulf %12, %10 : vector<128x128xf32>
    %14 = arith.addf %13, %6 : vector<128x128xf32>
    %15 = arith.truncf %14 : vector<128x128xf32> to vector<128x128xbf16>
    %c0_8 = arith.constant 0 : index
    %c0_9 = arith.constant 0 : index
    %16 = vector.load %arg4[%c0_8, %c0_9] : memref<128x128xbf16, #tpu.memory_space<vmem>>, vector<128x128xbf16>
    %cst_10 = arith.constant dense<0.000000e+00> : vector<128x128xf32>
    %17 = tpu.matmul %15, %16, %cst_10 {dimension_numbers = #tpu.dot_dimension_numbers<[1], [0], [0], [1], [0, 0, 1, 1], [], []>} : vector<128x128xbf16>, vector<128x128xbf16>, vector<128x128xf32> -> vector<128x128xf32>
    %c0_11 = arith.constant 0 : index
    %c0_12 = arith.constant 0 : index
    %18 = vector.load %arg5[%c0_11, %c0_12] : memref<1x128xf32, #tpu.memory_space<vmem>>, vector<1x128xf32>
    %19 = vector.broadcast %18 : vector<1x128xf32> to vector<128x128xf32>
    %20 = arith.addf %17, %19 : vector<128x128xf32>
    %c0_13 = arith.constant 0 : index
    %c0_14 = arith.constant 0 : index
    %21 = vector.load %arg8[%c0_13, %c0_14] : memref<128x128xf32, #tpu.memory_space<vmem>>, vector<128x128xf32>
    tpu.vector_store %arg8[%c0_13, %c0_14], %6 {strides = array<i32>} : memref<128x128xf32, #tpu.memory_space<vmem>>, vector<128x128xf32>,
    %c0_15 = arith.constant 0 : index
    %c0_16 = arith.constant 0 : index
    %22 = vector.load %arg9[%c0_15, %c0_16] : memref<128x128xf32, #tpu.memory_space<vmem>>, vector<128x128xf32>
    tpu.vector_store %arg9[%c0_15, %c0_16], %7 {strides = array<i32>} : memref<128x128xf32, #tpu.memory_space<vmem>>, vector<128x128xf32>,
    %c0_17 = arith.constant 0 : index
    %c0_18 = arith.constant 0 : index
    %23 = vector.load %arg10[%c0_17, %c0_18] : memref<128x128xf32, #tpu.memory_space<vmem>>, vector<128x128xf32>
    tpu.vector_store %arg10[%c0_17, %c0_18], %14 {strides = array<i32>} : memref<128x128xf32, #tpu.memory_space<vmem>>, vector<128x128xf32>,
    %c0_19 = arith.constant 0 : index
    %c0_20 = arith.constant 0 : index
    %24 = vector.load %arg7[%c0_19, %c0_20] : memref<128x128xf32, #tpu.memory_space<vmem>>, vector<128x128xf32>
    tpu.vector_store %arg7[%c0_19, %c0_20], %20 {strides = array<i32>} : memref<128x128xf32, #tpu.memory_space<vmem>>, vector<128x128xf32>,
    return
  }
  func.func @transform_0(%arg0: i32) -> (i32, i32) {
    %c0_i32 = arith.constant 0 : i32
    %c0_i32_0 = arith.constant 0 : i32
    return %arg0, %c0_i32 : i32, i32
  }
  func.func @transform_1(%arg0: i32) -> (i32, i32) {
    %c0_i32 = arith.constant 0 : i32
    %c0_i32_0 = arith.constant 0 : i32
    %c0_i32_1 = arith.constant 0 : i32
    return %c0_i32, %c0_i32_0 : i32, i32
  }
  func.func @transform_2(%arg0: i32) -> (i32, i32) {
    %c0_i32 = arith.constant 0 : i32
    %c0_i32_0 = arith.constant 0 : i32
    %c0_i32_1 = arith.constant 0 : i32
    return %c0_i32, %c0_i32_0 : i32, i32
  }
  func.func @transform_3(%arg0: i32) -> (i32, i32) {
    %c0_i32 = arith.constant 0 : i32
    %c0_i32_0 = arith.constant 0 : i32
    %c0_i32_1 = arith.constant 0 : i32
    return %c0_i32, %c0_i32_0 : i32, i32
  }
  func.func @transform_4(%arg0: i32) -> (i32, i32) {
    %c0_i32 = arith.constant 0 : i32
    %c0_i32_0 = arith.constant 0 : i32
    %c0_i32_1 = arith.constant 0 : i32
    return %c0_i32, %c0_i32_0 : i32, i32
  }
  func.func @transform_5(%arg0: i32) -> (i32, i32) {
    %c0_i32 = arith.constant 0 : i32
    %c0_i32_0 = arith.constant 0 : i32
    return %arg0, %c0_i32 : i32, i32
  }
  func.func @transform_6(%arg0: i32) -> (i32, i32) {
    %c0_i32 = arith.constant 0 : i32
    %c0_i32_0 = arith.constant 0 : i32
    return %arg0, %c0_i32 : i32, i32
  }
  func.func @transform_7(%arg0: i32) -> (i32, i32) {
    %c0_i32 = arith.constant 0 : i32
    %c0_i32_0 = arith.constant 0 : i32
    return %arg0, %c0_i32 : i32, i32
  }
  func.func @transform_8(%arg0: i32) -> (i32, i32) {
    %c0_i32 = arith.constant 0 : i32
    %c0_i32_0 = arith.constant 0 : i32
    return %arg0, %c0_i32 : i32, i32
  }
  func.func @transform_9(%arg0: i32) -> (i32, i32) {
    %c0_i32 = arith.constant 0 : i32
    %c0_i32_0 = arith.constant 0 : i32
    return %arg0, %c0_i32 : i32, i32
  }
}

</mosaic_0001>

<llo_original>
// kernel: tpu_custom_call.1
$region0: #{tpu_custom_call.1}
  #allocation0 [shape = 'u32[]', space=smem, size = 0x4, offset = 0x4, fixed_abs, tag = 'smem constant byte address 0x4 - core index']
  #allocation1 [shape = 'u32[144,128]{1,0:T(1,128)}', space=vmem, size = 0x12000, scoped, tag = 'internal scratch']
  %s0 = inlined_call_operand.hbm [shape: bf16[256,256], index: 0, kind: input, shape index: {}]
  %s1 = inlined_call_operand.hbm [shape: bf16[256,256], index: 1, kind: input, shape index: {}]
  %s2 = inlined_call_operand.vmem [shape: f32[1,256], index: 2, kind: input, shape index: {}]
  %s3 = inlined_call_operand.hbm [shape: bf16[128,128], index: 3, kind: input, shape index: {}]
  %s4 = inlined_call_operand.vmem [shape: f32[1,128], index: 4, kind: input, shape index: {}]
  %s5 = inlined_call_operand.hbm [shape: bf16[256,128], index: 5, kind: input, shape index: {}]
  %s6 = inlined_call_operand.hbm [shape: f32[256,128], index: 6, kind: output, shape index: {0}]
  %s7 = inlined_call_operand.hbm [shape: f32[256,128], index: 7, kind: output, shape index: {1}]
  %s8 = inlined_call_operand.hbm [shape: f32[256,128], index: 8, kind: output, shape index: {2}]
  %s9 = inlined_call_operand.hbm [shape: f32[256,128], index: 9, kind: output, shape index: {3}]
  %10 = xla_tuple %s6, %s7, %s8, %s9
  %s11 = sld [smem:[#allocation0]]
  $region97: #{tpu_custom_call.1} parent=0
    _
  %s13 = ssub.s32 1, %s11
  %s14 = scalar_select 0, %s13, %s11
  $region1: #{tpu_custom_call.1} parent=0
    #allocation2 [shape = 'u8[131072]{0}', space=vmem, size = 0x20000, scoped, tag = 'input window, operand 0']
    #allocation3 [shape = 's32[2]{0}', space=sflag, size = 0x8, scoped, tag = 'scoped memory for tpu_custom_call.1']
    #allocation4 [shape = 's32[2]{0}', space=sflag, size = 0x8, scoped, tag = 'scoped memory for tpu_custom_call.1']
    #allocation5 [shape = 'u8[131072]{0}', space=vmem, size = 0x20000, scoped, tag = 'input window, operand 1, single buffered']
    #allocation6 [shape = 's32[1]{0}', space=sflag, size = 0x4, scoped, tag = 'scoped memory for tpu_custom_call.1']
    #allocation7 [shape = 'u8[32768]{0}', space=vmem, size = 0x8000, scoped, tag = 'input window, operand 3, single buffered']
    #allocation8 [shape = 'u8[65536]{0}', space=vmem, size = 0x10000, scoped, tag = 'input window, operand 5']
    #allocation9 [shape = 's32[2]{0}', space=sflag, size = 0x8, scoped, tag = 'scoped memory for tpu_custom_call.1']
    #allocation10 [shape = 'u8[131072]{0}', space=vmem, size = 0x20000, scoped, tag = 'output window, operand 0']
    #allocation11 [shape = 'u8[131072]{0}', space=vmem, size = 0x20000, scoped, tag = 'output window, operand 1']
    #allocation12 [shape = 's32[2]{0}', space=sflag, size = 0x8, scoped, tag = 'scoped memory for tpu_custom_call.1']
    #allocation13 [shape = 'u8[131072]{0}', space=vmem, size = 0x20000, scoped, tag = 'output window, operand 2']
    #allocation14 [shape = 'u8[131072]{0}', space=vmem, size = 0x20000, scoped, tag = 'output window, operand 3']
    #allocation15 [shape = 's32[2]{0}', space=sflag, size = 0x8, scoped, tag = 'scoped memory for tpu_custom_call.1']
    %15 = vsyncpa [#allocation3], 0
    %s16 = scalar_lea.sflag [#allocation3], 1
    %17 = vsyncpa %s16, 0
    %18 = vsyncpa [#allocation6], 0
    %19 = vsyncpa [#allocation9], 0
    %s20 = scalar_lea.sflag [#allocation9], 1
    %21 = vsyncpa %s20, 0
    %22 = vsyncpa [#allocation4], 0
    %s23 = scalar_lea.sflag [#allocation4], 1
    %24 = vsyncpa %s23, 0
    %25 = vsyncpa [#allocation12], 0
    %s26 = scalar_lea.sflag [#allocation12], 1
    %27 = vsyncpa %s26, 0
    %28 = vsyncpa [#allocation15], 0
    %s29 = scalar_lea.sflag [#allocation15], 1
    %30 = vsyncpa %s29, 0
    loop: start=0, step=1, limit=4
    $region2: #{tpu_custom_call.1} parent=1 // loop_pre_header
      _
    $region3: #{tpu_custom_call.1} parent=1 // loop_header
      %s32 = sphi 0, %s36
      %p33 = scmp.ge.s32.totalorder %s32, 4
      %s42 = sphi 0, %s44
      %s45 = sphi 0, %s42
      %s46 = sphi 0, %s45
      %s62 = sphi 0, %s46
      %s66 = sphi 0, %s66
      %s68 = sphi 0, %s66
      %s69 = sphi 0, %s68
      %s83 = sphi 0, %s69
      %s87 = sphi 0, %s87
      %s89 = sphi 0, %s87
      %s90 = sphi 0, %s89
      %s104 = sphi 0, %s90
      %s108 = sphi 0, %s108
      %s110 = sphi 0, %s108
      %s111 = sphi 0, %s110
      %s125 = sphi 0, %s111
      %s129 = sphi 0, %s129
      %s131 = sphi 0, %s129
      %s132 = sphi 0, %s131
      %s146 = sphi 0, %s132
      %s152 = sphi 0, %s154
      %s155 = sphi 0, %s152
      %s156 = sphi 0, %s155
      %s172 = sphi 0, %s156
      %s178 = sphi 0, %s180
      %s181 = sphi 0, %s178
      %s182 = sphi 0, %s181
      %s198 = sphi 0, %s182
      %s204 = sphi 0, %s206
      %s207 = sphi 0, %s204
      %s208 = sphi 0, %s207
      %s224 = sphi 0, %s208
      %s230 = sphi 0, %s232
      %s233 = sphi 0, %s230
      %s234 = sphi 0, %s233
      %s250 = sphi 0, %s234
      %s256 = sphi 0, %s258
      %s259 = sphi 0, %s256
      %s260 = sphi 0, %s259
      %s276 = sphi 0, %s260
    $region4: #{tpu_custom_call.1} parent=1 // loop_header_branch
      %35 = sbr.rel (%p33) target = $region8
    $region5: #{tpu_custom_call.1} parent=1 // loop_body
      %s37 = ssub.s32 %s32, 1
      %s38 = ssub.s32 %s32, 2
      %s39 = sadd.s32 %s32, 1
      %s40 = ssub.s32 %s32, %s39
      %p41 = scmp.eq.s32.totalorder %s40, 0
      %s43 = sadd.s32 %s42, 1
      %s44 = scalar_select %p41, %s42, %s43
      %p47 = pneg %p41
      %p48 = scmp.eq.s32.totalorder %s32, 1
      %p49 = por %p47, %p48
      %p50 = scmp.ne.s32.totalorder %s42, %s45
      %p51 = scmp.eq.s32.totalorder %s32, 0
      %p52 = por %p50, %p51
      %p53 = scmp.ne.s32.totalorder %s42, %s45
      %p54 = scmp.eq.s32.totalorder %s37, 1
      %p55 = por %p53, %p54
      %p56 = scmp.ne.s32.totalorder %s45, %s46
      %p57 = scmp.eq.s32.totalorder %s37, 0
      %p58 = por %p56, %p57
      %p59 = scmp.ne.s32.totalorder %s45, %s46
      %p60 = scmp.eq.s32.totalorder %s38, 1
      %p61 = por %p59, %p60
      %p63 = scmp.ne.s32.totalorder %s46, %s62
      %p64 = scmp.eq.s32.totalorder %s38, 0
      %p65 = por %p63, %p64
      %s67 = sadd.s32 %s66, 1
      %p70 = scmp.eq.s32.totalorder %s32, 1
      %p71 = scmp.ne.s32.totalorder %s66, %s68
      %p72 = scmp.eq.s32.totalorder %s32, 0
      %p73 = por %p71, %p72
      %p74 = scmp.ne.s32.totalorder %s66, %s68
      %p75 = scmp.eq.s32.totalorder %s37, 1
      %p76 = por %p74, %p75
      %p77 = scmp.ne.s32.totalorder %s68, %s69
      %p78 = scmp.eq.s32.totalorder %s37, 0
      %p79 = por %p77, %p78
      %p80 = scmp.ne.s32.totalorder %s68, %s69
      %p81 = scmp.eq.s32.totalorder %s38, 1
      %p82 = por %p80, %p81
      %p84 = scmp.ne.s32.totalorder %s69, %s83
      %p85 = scmp.eq.s32.totalorder %s38, 0
      %p86 = por %p84, %p85
      %s88 = sadd.s32 %s87, 1
      %p91 = scmp.eq.s32.totalorder %s32, 1
      %p92 = scmp.ne.s32.totalorder %s87, %s89
      %p93 = scmp.eq.s32.totalorder %s32, 0
      %p94 = por %p92, %p93
      %p95 = scmp.ne.s32.totalorder %s87, %s89
      %p96 = scmp.eq.s32.totalorder %s37, 1
      %p97 = por %p95, %p96
      %p98 = scmp.ne.s32.totalorder %s89, %s90
      %p99 = scmp.eq.s32.totalorder %s37, 0
      %p100 = por %p98, %p99
      %p101 = scmp.ne.s32.totalorder %s89, %s90
      %p102 = scmp.eq.s32.totalorder %s38, 1
      %p103 = por %p101, %p102
      %p105 = scmp.ne.s32.totalorder %s90, %s104
      %p106 = scmp.eq.s32.totalorder %s38, 0
      %p107 = por %p105, %p106
      %s109 = sadd.s32 %s108, 1
      %p112 = scmp.eq.s32.totalorder %s32, 1
      %p113 = scmp.ne.s32.totalorder %s108, %s110
      %p114 = scmp.eq.s32.totalorder %s32, 0
      %p115 = por %p113, %p114
      %p116 = scmp.ne.s32.totalorder %s108, %s110
      %p117 = scmp.eq.s32.totalorder %s37, 1
      %p118 = por %p116, %p117
      %p119 = scmp.ne.s32.totalorder %s110, %s111
      %p120 = scmp.eq.s32.totalorder %s37, 0
      %p121 = por %p119, %p120
      %p122 = scmp.ne.s32.totalorder %s110, %s111
      %p123 = scmp.eq.s32.totalorder %s38, 1
      %p124 = por %p122, %p123
      %p126 = scmp.ne.s32.totalorder %s111, %s125
      %p127 = scmp.eq.s32.totalorder %s38, 0
      %p128 = por %p126, %p127
      %s130 = sadd.s32 %s129, 1
      %p133 = scmp.eq.s32.totalorder %s32, 1
      %p134 = scmp.ne.s32.totalorder %s129, %s131
      %p135 = scmp.eq.s32.totalorder %s32, 0
      %p136 = por %p134, %p135
      %p137 = scmp.ne.s32.totalorder %s129, %s131
      %p138 = scmp.eq.s32.totalorder %s37, 1
      %p139 = por %p137, %p138
      %p140 = scmp.ne.s32.totalorder %s131, %s132
      %p141 = scmp.eq.s32.totalorder %s37, 0
      %p142 = por %p140, %p141
      %p143 = scmp.ne.s32.totalorder %s131, %s132
      %p144 = scmp.eq.s32.totalorder %s38, 1
      %p145 = por %p143, %p144
      %p147 = scmp.ne.s32.totalorder %s132, %s146
      %p148 = scmp.eq.s32.totalorder %s38, 0
      %p149 = por %p147, %p148
      %s150 = ssub.s32 %s32, %s39
      %p151 = scmp.eq.s32.totalorder %s150, 0
      %s153 = sadd.s32 %s152, 1
      %s154 = scalar_select %p151, %s152, %s153
      %p157 = pneg %p151
      %p158 = scmp.eq.s32.totalorder %s32, 1
      %p159 = por %p157, %p158
      %p160 = scmp.ne.s32.totalorder %s152, %s155
      %p161 = scmp.eq.s32.totalorder %s32, 0
      %p162 = por %p160, %p161
      %p163 = scmp.ne.s32.totalorder %s152, %s155
      %p164 = scmp.eq.s32.totalorder %s37, 1
      %p165 = por %p163, %p164
      %p166 = scmp.ne.s32.totalorder %s155, %s156
      %p167 = scmp.eq.s32.totalorder %s37, 0
      %p168 = por %p166, %p167
      %p169 = scmp.ne.s32.totalorder %s155, %s156
      %p170 = scmp.eq.s32.totalorder %s38, 1
      %p171 = por %p169, %p170
      %p173 = scmp.ne.s32.totalorder %s156, %s172
      %p174 = scmp.eq.s32.totalorder %s38, 0
      %p175 = por %p173, %p174
      %s176 = ssub.s32 %s32, %s39
      %p177 = scmp.eq.s32.totalorder %s176, 0
      %s179 = sadd.s32 %s178, 1
      %s180 = scalar_select %p177, %s178, %s179
      %p183 = pneg %p177
      %p184 = scmp.eq.s32.totalorder %s32, 1
      %p185 = por %p183, %p184
      %p186 = scmp.ne.s32.totalorder %s178, %s181
      %p187 = scmp.eq.s32.totalorder %s32, 0
      %p188 = por %p186, %p187
      %p189 = scmp.ne.s32.totalorder %s178, %s181
      %p190 = scmp.eq.s32.totalorder %s37, 1
      %p191 = por %p189, %p190
      %p192 = scmp.ne.s32.totalorder %s181, %s182
      %p193 = scmp.eq.s32.totalorder %s37, 0
      %p194 = por %p192, %p193
      %p195 = scmp.ne.s32.totalorder %s181, %s182
      %p196 = scmp.eq.s32.totalorder %s38, 1
      %p197 = por %p195, %p196
      %p199 = scmp.ne.s32.totalorder %s182, %s198
      %p200 = scmp.eq.s32.totalorder %s38, 0
      %p201 = por %p199, %p200
      %s202 = ssub.s32 %s32, %s39
      %p203 = scmp.eq.s32.totalorder %s202, 0
      %s205 = sadd.s32 %s204, 1
      %s206 = scalar_select %p203, %s204, %s205
      %p209 = pneg %p203
      %p210 = scmp.eq.s32.totalorder %s32, 1
      %p211 = por %p209, %p210
      %p212 = scmp.ne.s32.totalorder %s204, %s207
      %p213 = scmp.eq.s32.totalorder %s32, 0
      %p214 = por %p212, %p213
      %p215 = scmp.ne.s32.totalorder %s204, %s207
      %p216 = scmp.eq.s32.totalorder %s37, 1
      %p217 = por %p215, %p216
      %p218 = scmp.ne.s32.totalorder %s207, %s208
      %p219 = scmp.eq.s32.totalorder %s37, 0
      %p220 = por %p218, %p219
      %p221 = scmp.ne.s32.totalorder %s207, %s208
      %p222 = scmp.eq.s32.totalorder %s38, 1
      %p223 = por %p221, %p222
      %p225 = scmp.ne.s32.totalorder %s208, %s224
      %p226 = scmp.eq.s32.totalorder %s38, 0
      %p227 = por %p225, %p226
      %s228 = ssub.s32 %s32, %s39
      %p229 = scmp.eq.s32.totalorder %s228, 0
      %s231 = sadd.s32 %s230, 1
      %s232 = scalar_select %p229, %s230, %s231
      %p235 = pneg %p229
      %p236 = scmp.eq.s32.totalorder %s32, 1
      %p237 = por %p235, %p236
      %p238 = scmp.ne.s32.totalorder %s230, %s233
      %p239 = scmp.eq.s32.totalorder %s32, 0
      %p240 = por %p238, %p239
      %p241 = scmp.ne.s32.totalorder %s230, %s233
      %p242 = scmp.eq.s32.totalorder %s37, 1
      %p243 = por %p241, %p242
      %p244 = scmp.ne.s32.totalorder %s233, %s234
      %p245 = scmp.eq.s32.totalorder %s37, 0
      %p246 = por %p244, %p245
      %p247 = scmp.ne.s32.totalorder %s233, %s234
      %p248 = scmp.eq.s32.totalorder %s38, 1
      %p249 = por %p247, %p248
      %p251 = scmp.ne.s32.totalorder %s234, %s250
      %p252 = scmp.eq.s32.totalorder %s38, 0
      %p253 = por %p251, %p252
      %s254 = ssub.s32 %s32, %s39
      %p255 = scmp.eq.s32.totalorder %s254, 0
      %s257 = sadd.s32 %s256, 1
      %s258 = scalar_select %p255, %s256, %s257
      %p261 = pneg %p255
      %p262 = scmp.eq.s32.totalorder %s32, 1
      %p263 = por %p261, %p262
      %p264 = scmp.ne.s32.totalorder %s256, %s259
      %p265 = scmp.eq.s32.totalorder %s32, 0
      %p266 = por %p264, %p265
      %p267 = scmp.ne.s32.totalorder %s256, %s259
      %p268 = scmp.eq.s32.totalorder %s37, 1
      %p269 = por %p267, %p268
      %p270 = scmp.ne.s32.totalorder %s259, %s260
      %p271 = scmp.eq.s32.totalorder %s37, 0
      %p272 = por %p270, %p271
      %p273 = scmp.ne.s32.totalorder %s259, %s260
      %p274 = scmp.eq.s32.totalorder %s38, 1
      %p275 = por %p273, %p274
      %p277 = scmp.ne.s32.totalorder %s260, %s276
      %p278 = scmp.eq.s32.totalorder %s38, 0
      %p279 = por %p277, %p278
      %p280 = scmp.le.s32.totalorder 1, %s32
      %p281 = scmp.lt.s32.totalorder %s32, 3
      %p282 = pnand %p280, %p281
      %p283 = pneg %p282
      // Predicated region
      $region9: #{tpu_custom_call.1} parent=5 // pred_check
        _
      $region10: #{tpu_custom_call.1} parent=5 // pred_check_branch
        %285 = sbr.rel (%p282) target = $region12
      $region11: #{tpu_custom_call.1} parent=5 // pred_region
        %s286 = ssub.s32 %s32, 1
        // Predicated region
        $region13: #{tpu_custom_call.1} parent=11 // pred_check
          %p287 = pneg %p79
        $region14: #{tpu_custom_call.1} parent=11 // pred_check_branch
          %289 = sbr.rel (%p287) target = $region16
        $region15: #{tpu_custom_call.1} parent=11 // pred_region
          %s291 = ssub.s32 4096, 4096
          %292 = vsyncadd [#allocation6], %s291
          %s293 = sshll.u32 [#allocation5], 4
          %s294 = int_to_ptr.vmem [resolvable:$true] %s293
          %299 = dma.hbm_to_vmem [thread:$0]  %s1, 4096, %s294, [#allocation6], 128, 128, 8
        $region16: #{tpu_custom_call.1} parent=11 // pred_fallthru
          _
        // Predicated region
        $region17: #{tpu_custom_call.1} parent=11 // pred_check
          %p300 = pneg %p100
        $region18: #{tpu_custom_call.1} parent=11 // pred_check_branch
          %302 = sbr.rel (%p300) target = $region20
        $region19: #{tpu_custom_call.1} parent=11 // pred_region
          _
        $region20: #{tpu_custom_call.1} parent=11 // pred_fallthru
          _
        // Predicated region
        $region21: #{tpu_custom_call.1} parent=11 // pred_check
          %p303 = pneg %p121
        $region22: #{tpu_custom_call.1} parent=11 // pred_check_branch
          %305 = sbr.rel (%p303) target = $region24
        $region23: #{tpu_custom_call.1} parent=11 // pred_region
          %s307 = ssub.s32 1024, 1024
          %308 = vsyncadd [#allocation6], %s307
          %s309 = sshll.u32 [#allocation7], 4
          %s310 = int_to_ptr.vmem [resolvable:$true] %s309
          %315 = dma.hbm_to_vmem [thread:$0]  %s3, 1024, %s310, [#allocation6], 64, 64, 4
        $region24: #{tpu_custom_call.1} parent=11 // pred_fallthru
          _
        // Predicated region
        $region25: #{tpu_custom_call.1} parent=11 // pred_check
          %p316 = pneg %p142
        $region26: #{tpu_custom_call.1} parent=11 // pred_check_branch
          %318 = sbr.rel (%p316) target = $region28
        $region27: #{tpu_custom_call.1} parent=11 // pred_region
          _
        $region28: #{tpu_custom_call.1} parent=11 // pred_fallthru
          _
      $region12: #{tpu_custom_call.1} parent=5 // pred_fallthru
        _
      %p319 = scmp.lt.s32.totalorder %s32, 2
      // Predicated region
      $region29: #{tpu_custom_call.1} parent=5 // pred_check
        %p320 = pneg %p319
      $region30: #{tpu_custom_call.1} parent=5 // pred_check_branch
        %322 = sbr.rel (%p320) target = $region32
      $region31: #{tpu_custom_call.1} parent=5 // pred_region
        // Predicated region
        $region33: #{tpu_custom_call.1} parent=31 // pred_check
          %p323 = pneg %p52
        $region34: #{tpu_custom_call.1} parent=31 // pred_check_branch
          %325 = sbr.rel (%p323) target = $region36
        $region35: #{tpu_custom_call.1} parent=31 // pred_region
          %s326 = sand.u32 %s42, 1
          %s327 = scalar_lea.sflag [#allocation3], %s326
          %s328 = sand.u32 %s42, 1
          %s329 = smul.addr %s328, 128
          %s330 = scalar_lea.vmem [#allocation2], %s329
          %s331 = smul.u32 16, %s32
          %s333 = ssub.s32 2048, 2048
          %334 = vsyncadd %s327, %s333
          %s335 = smul.addr %s331, 2
          %s336 = smul.addr %s335, 64
          %s337 = scalar_lea.hbm %s0, %s336
          %s338 = sshll.u32 %s330, 4
          %s339 = int_to_ptr.vmem [resolvable:$true] %s338
          %344 = dma.hbm_to_vmem [thread:$0]  %s337, 2048, %s339, %s327, 128, 128, 8
        $region36: #{tpu_custom_call.1} parent=31 // pred_fallthru
          _
        // Predicated region
        $region37: #{tpu_custom_call.1} parent=31 // pred_check
          %p345 = pneg %p162
        $region38: #{tpu_custom_call.1} parent=31 // pred_check_branch
          %347 = sbr.rel (%p345) target = $region40
        $region39: #{tpu_custom_call.1} parent=31 // pred_region
          %s348 = sand.u32 %s152, 1
          %s349 = scalar_lea.sflag [#allocation9], %s348
          %s350 = sand.u32 %s152, 1
          %s351 = smul.addr %s350, 64
          %s352 = scalar_lea.vmem [#allocation8], %s351
          %s353 = smul.u32 16, %s32
          %s355 = ssub.s32 1024, 1024
          %356 = vsyncadd %s349, %s355
          %s357 = smul.addr %s353, 64
          %s358 = scalar_lea.hbm %s5, %s357
          %s359 = sshll.u32 %s352, 4
          %s360 = int_to_ptr.vmem [resolvable:$true] %s359
          %365 = dma.hbm_to_vmem [thread:$0]  %s358, 1024, %s360, %s349, 64, 64, 4
        $region40: #{tpu_custom_call.1} parent=31 // pred_fallthru
          _
      $region32: #{tpu_custom_call.1} parent=5 // pred_fallthru
        _
      %p366 = scmp.le.s32.totalorder 1, %s32
      %p367 = scmp.lt.s32.totalorder %s32, 3
      %p368 = pnand %p366, %p367
      %p369 = pneg %p368
      // Predicated region
      $region41: #{tpu_custom_call.1} parent=5 // pred_check
        _
      $region42: #{tpu_custom_call.1} parent=5 // pred_check_branch
        %371 = sbr.rel (%p368) target = $region44
      $region43: #{tpu_custom_call.1} parent=5 // pred_region
        %s372 = ssub.s32 %s32, 1
        %s373 = sand.u32 %s45, 1
        %s374 = scalar_lea.sflag [#allocation3], %s373
        %s375 = sand.u32 %s45, 1
        %s376 = smul.addr %s375, 128
        %s377 = scalar_lea.vmem [#allocation2], %s376
        // Predicated region
        $region45: #{tpu_custom_call.1} parent=43 // pred_check
          %p378 = pneg %p58
        $region46: #{tpu_custom_call.1} parent=43 // pred_check_branch
          %380 = sbr.rel (%p378) target = $region48
        $region47: #{tpu_custom_call.1} parent=43 // pred_region
          %381 = dma.done %s374, 2048
        $region48: #{tpu_custom_call.1} parent=43 // pred_fallthru
          _
        // Predicated region
        $region49: #{tpu_custom_call.1} parent=43 // pred_check
          %p382 = pneg %p79
        $region50: #{tpu_custom_call.1} parent=43 // pred_check_branch
          %384 = sbr.rel (%p382) target = $region52
        $region51: #{tpu_custom_call.1} parent=43 // pred_region
          %385 = dma.done [#allocation6], 4096
        $region52: #{tpu_custom_call.1} parent=43 // pred_fallthru
          _
        // Predicated region
        $region53: #{tpu_custom_call.1} parent=43 // pred_check
          %p386 = pneg %p121
        $region54: #{tpu_custom_call.1} parent=43 // pred_check_branch
          %388 = sbr.rel (%p386) target = $region56
        $region55: #{tpu_custom_call.1} parent=43 // pred_region
          %389 = dma.done [#allocation6], 1024
        $region56: #{tpu_custom_call.1} parent=43 // pred_fallthru
          _
        %s390 = sand.u32 %s155, 1
        %s391 = scalar_lea.sflag [#allocation9], %s390
        %s392 = sand.u32 %s155, 1
        %s393 = smul.addr %s392, 64
        %s394 = scalar_lea.vmem [#allocation8], %s393
        // Predicated region
        $region57: #{tpu_custom_call.1} parent=43 // pred_check
          %p395 = pneg %p168
        $region58: #{tpu_custom_call.1} parent=43 // pred_check_branch
          %397 = sbr.rel (%p395) target = $region60
        $region59: #{tpu_custom_call.1} parent=43 // pred_region
          %398 = dma.done %s391, 1024
        $region60: #{tpu_custom_call.1} parent=43 // pred_fallthru
          _
        %s399 = sand.u32 %s45, 1
        %s400 = scalar_lea.sflag [#allocation3], %s399
        %s401 = sand.u32 %s45, 1
        %s402 = smul.addr %s401, 128
        %s403 = scalar_lea.vmem [#allocation2], %s402
        %p404 = pneg %p58
        %p405 = pneg %p55
        %p406 = pneg %p79
        %p407 = pneg %p76
        %p408 = pneg %p100
        %p409 = pneg %p97
        %p410 = pneg %p121
        %p411 = pneg %p118
        %p412 = pneg %p142
        %p413 = pneg %p139
        %s414 = sand.u32 %s155, 1
        %s415 = scalar_lea.sflag [#allocation9], %s414
        %s416 = sand.u32 %s155, 1
        %s417 = smul.addr %s416, 64
        %s418 = scalar_lea.vmem [#allocation8], %s417
        %p419 = pneg %p168
        %p420 = pneg %p165
        %p421 = pneg %p194
        %p422 = pneg %p191
        %s423 = sand.u32 %s181, 1
        %s424 = scalar_lea.sflag [#allocation4], %s423
        %s425 = sand.u32 %s181, 1
        %s426 = smul.addr %s425, 128
        %s427 = scalar_lea.vmem [#allocation10], %s426
        %p428 = pneg %p220
        %p429 = pneg %p217
        %s430 = sand.u32 %s37, 1
        %s431 = scalar_lea.sflag [#allocation12], %s430
        %s432 = sand.u32 %s207, 1
        %s433 = smul.addr %s432, 128
        %s434 = scalar_lea.vmem [#allocation11], %s433
        %p435 = pneg %p246
        %p436 = pneg %p243
        %s437 = sand.u32 %s37, 1
        %s438 = scalar_lea.sflag [#allocation12], %s437
        %s439 = sand.u32 %s233, 1
        %s440 = smul.addr %s439, 128
        %s441 = scalar_lea.vmem [#allocation13], %s440
        %p442 = pneg %p272
        %p443 = pneg %p269
        %s444 = sand.u32 %s259, 1
        %s445 = scalar_lea.sflag [#allocation15], %s444
        %s446 = sand.u32 %s259, 1
        %s447 = smul.addr %s446, 128
        %s448 = scalar_lea.vmem [#allocation14], %s447
        %s449 = smul.u32 16, %s37
        %s450 = smul.u32 16, %s37
        %s451 = smul.u32 16, %s37
        %s452 = smul.u32 16, %s37
        %s453 = smul.u32 16, %s37
        %s454 = smul.u32 16, %s37
        %v456 = vld [vmem:[%s377] sm:$0xff]
        %v457 = vld [vmem:[%s377 + $0x8] sm:$0xff]
        %v458 = vld [vmem:[%s377 + $0x10] sm:$0xff]
        %v459 = vld [vmem:[%s377 + $0x18] sm:$0xff]
        %v460 = vld [vmem:[%s377 + $0x20] sm:$0xff]
        %v461 = vld [vmem:[%s377 + $0x28] sm:$0xff]
        %v462 = vld [vmem:[%s377 + $0x30] sm:$0xff]
        %v463 = vld [vmem:[%s377 + $0x38] sm:$0xff]
        %v464 = vld [vmem:[%s377 + $0x40] sm:$0xff]
        %v465 = vld [vmem:[%s377 + $0x48] sm:$0xff]
        %v466 = vld [vmem:[%s377 + $0x50] sm:$0xff]
        %v467 = vld [vmem:[%s377 + $0x58] sm:$0xff]
        %v468 = vld [vmem:[%s377 + $0x60] sm:$0xff]
        %v469 = vld [vmem:[%s377 + $0x68] sm:$0xff]
        %v470 = vld [vmem:[%s377 + $0x70] sm:$0xff]
        %v471 = vld [vmem:[%s377 + $0x78] sm:$0xff]
        %v472 = vld [vmem:[#allocation5] sm:$0xff]
        %v473 = vld [vmem:[#allocation5 + $0x8] sm:$0xff]
        %v474 = vld [vmem:[#allocation5 + $0x10] sm:$0xff]
        %v475 = vld [vmem:[#allocation5 + $0x18] sm:$0xff]
        %v476 = vld [vmem:[#allocation5 + $0x20] sm:$0xff]
        %v477 = vld [vmem:[#allocation5 + $0x28] sm:$0xff]
        %v478 = vld [vmem:[#allocation5 + $0x30] sm:$0xff]
        %v479 = vld [vmem:[#allocation5 + $0x38] sm:$0xff]
        %v480 = vld [vmem:[#allocation5 + $0x40] sm:$0xff]
        %v481 = vld [vmem:[#allocation5 + $0x48] sm:$0xff]
        %v482 = vld [vmem:[#allocation5 + $0x50] sm:$0xff]
        %v483 = vld [vmem:[#allocation5 + $0x58] sm:$0xff]
        %v484 = vld [vmem:[#allocation5 + $0x60] sm:$0xff]
        %v485 = vld [vmem:[#allocation5 + $0x68] sm:$0xff]
        %v486 = vld [vmem:[#allocation5 + $0x70] sm:$0xff]
        %v487 = vld [vmem:[#allocation5 + $0x78] sm:$0xff]
        %v488 = vld [vmem:[#allocation5 + $0x80] sm:$0xff]
        %v489 = vld [vmem:[#allocation5 + $0x88] sm:$0xff]
        %v490 = vld [vmem:[#allocation5 + $0x90] sm:$0xff]
        %v491 = vld [vmem:[#allocation5 + $0x98] sm:$0xff]
        %v492 = vld [vmem:[#allocation5 + $0xa0] sm:$0xff]
        %v493 = vld [vmem:[#allocation5 + $0xa8] sm:$0xff]
        %v494 = vld [vmem:[#allocation5 + $0xb0] sm:$0xff]
        %v495 = vld [vmem:[#allocation5 + $0xb8] sm:$0xff]
        %v496 = vld [vmem:[#allocation5 + $0xc0] sm:$0xff]
        %v497 = vld [vmem:[#allocation5 + $0xc8] sm:$0xff]
        %v498 = vld [vmem:[#allocation5 + $0xd0] sm:$0xff]
        %v499 = vld [vmem:[#allocation5 + $0xd8] sm:$0xff]
        %v500 = vld [vmem:[#allocation5 + $0xe0] sm:$0xff]
        %v501 = vld [vmem:[#allocation5 + $0xe8] sm:$0xff]
        %v502 = vld [vmem:[#allocation5 + $0xf0] sm:$0xff]
        %v503 = vld [vmem:[#allocation5 + $0xf8] sm:$0xff]
        %v504 = vld [vmem:[%s2] sm:$0x3]
        %v506 = vlaneseq
        %v507 = vshrl.u32 %v506, 7
        %v508 = vsub.s32 0, %v507
        %v509 = vrot.slane %v504, %v508
        %v510 = vlaneseq
        %v511 = vshrl.u32 %v510, 7
        %v512 = vsub.s32 1, %v511
        %v513 = vrot.slane %v504, %v512
        %v532 = vunpack.c.l.b16 %v456
        %v533 = vunpack.c.h.b16 %v456
        %v534 = vunpack.c.l.b16 %v457
        %v535 = vunpack.c.h.b16 %v457
        %v536 = vunpack.c.l.b16 %v458
        %v537 = vunpack.c.h.b16 %v458
        %v538 = vunpack.c.l.b16 %v459
        %v539 = vunpack.c.h.b16 %v459
        %v540 = vunpack.c.l.b16 %v460
        %v541 = vunpack.c.h.b16 %v460
        %v542 = vunpack.c.l.b16 %v461
        %v543 = vunpack.c.h.b16 %v461
        %v544 = vunpack.c.l.b16 %v462
        %v545 = vunpack.c.h.b16 %v462
        %v546 = vunpack.c.l.b16 %v463
        %v547 = vunpack.c.h.b16 %v463
        %v548 = vunpack.c.l.b16 %v464
        %v549 = vunpack.c.h.b16 %v464
        %v550 = vunpack.c.l.b16 %v465
        %v551 = vunpack.c.h.b16 %v465
        %v552 = vunpack.c.l.b16 %v466
        %v553 = vunpack.c.h.b16 %v466
        %v554 = vunpack.c.l.b16 %v467
        %v555 = vunpack.c.h.b16 %v467
        %v556 = vunpack.c.l.b16 %v468
        %v557 = vunpack.c.h.b16 %v468
        %v558 = vunpack.c.l.b16 %v469
        %v559 = vunpack.c.h.b16 %v469
        %v560 = vunpack.c.l.b16 %v470
        %v561 = vunpack.c.h.b16 %v470
        %v562 = vunpack.c.l.b16 %v471
        %v563 = vunpack.c.h.b16 %v471
        %v564 = vpack.c.b16 %v534, %v532
        %v565 = vpack.c.b16 %v535, %v533
        %v566 = vpack.c.b16 %v538, %v536
        %v567 = vpack.c.b16 %v539, %v537
        %v568 = vpack.c.b16 %v542, %v540
        %v569 = vpack.c.b16 %v543, %v541
        %v570 = vpack.c.b16 %v546, %v544
        %v571 = vpack.c.b16 %v547, %v545
        %v572 = vpack.c.b16 %v550, %v548
        %v573 = vpack.c.b16 %v551, %v549
        %v574 = vpack.c.b16 %v554, %v552
        %v575 = vpack.c.b16 %v555, %v553
        %v576 = vpack.c.b16 %v558, %v556
        %v577 = vpack.c.b16 %v559, %v557
        %v578 = vpack.c.b16 %v562, %v560
        %v579 = vpack.c.b16 %v563, %v561
        %v628 = vunpack.c.l.b16 %v472
        %v629 = vunpack.c.h.b16 %v472
        %v630 = vunpack.c.l.b16 %v473
        %v631 = vunpack.c.h.b16 %v473
        %v632 = vunpack.c.l.b16 %v474
        %v633 = vunpack.c.h.b16 %v474
        %v634 = vunpack.c.l.b16 %v475
        %v635 = vunpack.c.h.b16 %v475
        %v636 = vunpack.c.l.b16 %v476
        %v637 = vunpack.c.h.b16 %v476
        %v638 = vunpack.c.l.b16 %v477
        %v639 = vunpack.c.h.b16 %v477
        %v640 = vunpack.c.l.b16 %v478
        %v641 = vunpack.c.h.b16 %v478
        %v642 = vunpack.c.l.b16 %v479
        %v643 = vunpack.c.h.b16 %v479
        %v644 = vunpack.c.l.b16 %v480
        %v645 = vunpack.c.h.b16 %v480
        %v646 = vunpack.c.l.b16 %v481
        %v647 = vunpack.c.h.b16 %v481
        %v648 = vunpack.c.l.b16 %v482
        %v649 = vunpack.c.h.b16 %v482
        %v650 = vunpack.c.l.b16 %v483
        %v651 = vunpack.c.h.b16 %v483
        %v652 = vunpack.c.l.b16 %v484
        %v653 = vunpack.c.h.b16 %v484
        %v654 = vunpack.c.l.b16 %v485
        %v655 = vunpack.c.h.b16 %v485
        %v656 = vunpack.c.l.b16 %v486
        %v657 = vunpack.c.h.b16 %v486
        %v658 = vunpack.c.l.b16 %v487
        %v659 = vunpack.c.h.b16 %v487
        %v660 = vunpack.c.l.b16 %v488
        %v661 = vunpack.c.h.b16 %v488
        %v662 = vunpack.c.l.b16 %v489
        %v663 = vunpack.c.h.b16 %v489
        %v664 = vunpack.c.l.b16 %v490
        %v665 = vunpack.c.h.b16 %v490
        %v666 = vunpack.c.l.b16 %v491
        %v667 = vunpack.c.h.b16 %v491
        %v668 = vunpack.c.l.b16 %v492
        %v669 = vunpack.c.h.b16 %v492
        %v670 = vunpack.c.l.b16 %v493
        %v671 = vunpack.c.h.b16 %v493
        %v672 = vunpack.c.l.b16 %v494
        %v673 = vunpack.c.h.b16 %v494
        %v674 = vunpack.c.l.b16 %v495
        %v675 = vunpack.c.h.b16 %v495
        %v676 = vunpack.c.l.b16 %v496
        %v677 = vunpack.c.h.b16 %v496
        %v678 = vunpack.c.l.b16 %v497
        %v679 = vunpack.c.h.b16 %v497
        %v680 = vunpack.c.l.b16 %v498
        %v681 = vunpack.c.h.b16 %v498
        %v682 = vunpack.c.l.b16 %v499
        %v683 = vunpack.c.h.b16 %v499
        %v684 = vunpack.c.l.b16 %v500
        %v685 = vunpack.c.h.b16 %v500
        %v686 = vunpack.c.l.b16 %v501
        %v687 = vunpack.c.h.b16 %v501
        %v688 = vunpack.c.l.b16 %v502
        %v689 = vunpack.c.h.b16 %v502
        %v690 = vunpack.c.l.b16 %v503
        %v691 = vunpack.c.h.b16 %v503
        %v692 = vpack.c.b16 %v630, %v628
        %v693 = vpack.c.b16 %v631, %v629
        %v694 = vpack.c.b16 %v634, %v632
        %v695 = vpack.c.b16 %v635, %v633
        %v696 = vpack.c.b16 %v638, %v636
        %v697 = vpack.c.b16 %v639, %v637
        %v698 = vpack.c.b16 %v642, %v640
        %v699 = vpack.c.b16 %v643, %v641
        %v700 = vpack.c.b16 %v646, %v644
        %v701 = vpack.c.b16 %v647, %v645
        %v702 = vpack.c.b16 %v650, %v648
        %v703 = vpack.c.b16 %v651, %v649
        %v704 = vpack.c.b16 %v654, %v652
        %v705 = vpack.c.b16 %v655, %v653
        %v706 = vpack.c.b16 %v658, %v656
        %v707 = vpack.c.b16 %v659, %v657
        %v708 = vpack.c.b16 %v662, %v660
        %v709 = vpack.c.b16 %v663, %v661
        %v710 = vpack.c.b16 %v666, %v664
        %v711 = vpack.c.b16 %v667, %v665
        %v712 = vpack.c.b16 %v670, %v668
        %v713 = vpack.c.b16 %v671, %v669
        %v714 = vpack.c.b16 %v674, %v672
        %v715 = vpack.c.b16 %v675, %v673
        %v716 = vpack.c.b16 %v678, %v676
        %v717 = vpack.c.b16 %v679, %v677
        %v718 = vpack.c.b16 %v682, %v680
        %v719 = vpack.c.b16 %v683, %v681
        %v720 = vpack.c.b16 %v686, %v684
        %v721 = vpack.c.b16 %v687, %v685
        %v722 = vpack.c.b16 %v690, %v688
        %v723 = vpack.c.b16 %v691, %v689
        %756 = vmatprep.subr.bf16.mxu0 %v693
        %757 = vmatpush1.bf16.msra.mxu0 %v692
        %758 = vmatprep.subr.bf16.mxu0 %v695
        %759 = vmatpush1.bf16.msra.mxu0 %v694
        %760 = vmatprep.subr.bf16.mxu0 %v697
        %761 = vmatpush1.bf16.msra.mxu0 %v696
        %762 = vmatprep.subr.bf16.mxu0 %v699
        %763 = vmatpush1.bf16.msra.mxu0 %v698
        %764 = vmatprep.subr.bf16.mxu0 %v701
        %765 = vmatpush1.bf16.msra.mxu0 %v700
        %766 = vmatprep.subr.bf16.mxu0 %v703
        %767 = vmatpush1.bf16.msra.mxu0 %v702
        %768 = vmatprep.subr.bf16.mxu0 %v705
        %769 = vmatpush1.bf16.msra.mxu0 %v704
        %770 = vmatprep.subr.bf16.mxu0 %v707
        %771 = vmatpush1.bf16.msra.mxu0 %v706
        %772 = vmatprep.subr.bf16.mxu0 %v709
        %773 = vmatpush1.bf16.msra.mxu0 %v708
        %774 = vmatprep.subr.bf16.mxu0 %v711
        %775 = vmatpush1.bf16.msra.mxu0 %v710
        %776 = vmatprep.subr.bf16.mxu0 %v713
        %777 = vmatpush1.bf16.msra.mxu0 %v712
        %778 = vmatprep.subr.bf16.mxu0 %v715
        %779 = vmatpush1.bf16.msra.mxu0 %v714
        %780 = vmatprep.subr.bf16.mxu0 %v717
        %781 = vmatpush1.bf16.msra.mxu0 %v716
        %782 = vmatprep.subr.bf16.mxu0 %v719
        %783 = vmatpush1.bf16.msra.mxu0 %v718
        %784 = vmatprep.subr.bf16.mxu0 %v721
        %785 = vmatpush1.bf16.msra.mxu0 %v720
        %786 = vmatprep.subr.bf16.mxu0 %v723
        %787 = vmatpush1.bf16.msra.mxu0 %v722
        %788 = vmatprep.mubr.bf16.mxu0 %v565
        %789 = vmatmul.mubr.bf16.gmra.mrb[0].mxu0 %v564
        %v790 = vpop.f32.mrb[0].mxu0
        %v791 = vadd.f32 %v509, %v790
        %v792 = vpop.f32.mrb[0].mxu0
        %v793 = vadd.f32 %v513, %v792
        %v794 = vpop.f32.mrb[0].mxu0
        %v795 = vadd.f32 %v509, %v794
        %v796 = vpop.f32.mrb[0].mxu0
        %v797 = vadd.f32 %v513, %v796
        %798 = vmatprep.mubr.bf16.mxu0 %v567
        %799 = vmatmul.mubr.bf16.gmra.mrb[0].mxu0 %v566
        %v800 = vpop.f32.mrb[0].mxu0
        %v801 = vadd.f32 %v509, %v800
        %v802 = vpop.f32.mrb[0].mxu0
        %v803 = vadd.f32 %v513, %v802
        %v804 = vpop.f32.mrb[0].mxu0
        %v805 = vadd.f32 %v509, %v804
        %v806 = vpop.f32.mrb[0].mxu0
        %v807 = vadd.f32 %v513, %v806
        %808 = vmatprep.mubr.bf16.mxu0 %v569
        %809 = vmatmul.mubr.bf16.gmra.mrb[0].mxu0 %v568
        %v810 = vpop.f32.mrb[0].mxu0
        %v811 = vadd.f32 %v509, %v810
        %v812 = vpop.f32.mrb[0].mxu0
        %v813 = vadd.f32 %v513, %v812
        %v814 = vpop.f32.mrb[0].mxu0
        %v815 = vadd.f32 %v509, %v814
        %v816 = vpop.f32.mrb[0].mxu0
        %v817 = vadd.f32 %v513, %v816
        %818 = vmatprep.mubr.bf16.mxu0 %v571
        %819 = vmatmul.mubr.bf16.gmra.mrb[0].mxu0 %v570
        %v820 = vpop.f32.mrb[0].mxu0
        %v821 = vadd.f32 %v509, %v820
        %v822 = vpop.f32.mrb[0].mxu0
        %v823 = vadd.f32 %v513, %v822
        %v824 = vpop.f32.mrb[0].mxu0
        %v825 = vadd.f32 %v509, %v824
        %v826 = vpop.f32.mrb[0].mxu0
        %v827 = vadd.f32 %v513, %v826
        %828 = vmatprep.mubr.bf16.mxu0 %v573
        %829 = vmatmul.mubr.bf16.gmra.mrb[0].mxu0 %v572
        %v830 = vpop.f32.mrb[0].mxu0
        %v831 = vadd.f32 %v509, %v830
        %v832 = vpop.f32.mrb[0].mxu0
        %v833 = vadd.f32 %v513, %v832
        %v834 = vpop.f32.mrb[0].mxu0
        %v835 = vadd.f32 %v509, %v834
        %v836 = vpop.f32.mrb[0].mxu0
        %v837 = vadd.f32 %v513, %v836
        %838 = vmatprep.mubr.bf16.mxu0 %v575
        %839 = vmatmul.mubr.bf16.gmra.mrb[0].mxu0 %v574
        %v840 = vpop.f32.mrb[0].mxu0
        %v841 = vadd.f32 %v509, %v840
        %v842 = vpop.f32.mrb[0].mxu0
        %v843 = vadd.f32 %v513, %v842
        %v844 = vpop.f32.mrb[0].mxu0
        %v845 = vadd.f32 %v509, %v844
        %v846 = vpop.f32.mrb[0].mxu0
        %v847 = vadd.f32 %v513, %v846
        %848 = vmatprep.mubr.bf16.mxu0 %v577
        %849 = vmatmul.mubr.bf16.gmra.mrb[0].mxu0 %v576
        %v850 = vpop.f32.mrb[0].mxu0
        %v851 = vadd.f32 %v509, %v850
        %v852 = vpop.f32.mrb[0].mxu0
        %v853 = vadd.f32 %v513, %v852
        %v854 = vpop.f32.mrb[0].mxu0
        %v855 = vadd.f32 %v509, %v854
        %v856 = vpop.f32.mrb[0].mxu0
        %v857 = vadd.f32 %v513, %v856
        %858 = vmatprep.mubr.bf16.mxu0 %v579
        %859 = vmatmul.mubr.bf16.gmra.mrb[0].mxu0 %v578
        %v860 = vpop.f32.mrb[0].mxu0
        %v861 = vadd.f32 %v509, %v860
        %v862 = vpop.f32.mrb[0].mxu0
        %v863 = vadd.f32 %v513, %v862
        %v864 = vpop.f32.mrb[0].mxu0
        %v865 = vadd.f32 %v509, %v864
        %v866 = vpop.f32.mrb[0].mxu0
        %v867 = vadd.f32 %v513, %v866
        %868 = vdwg.mxu0
        %v869 = vmul.f32 %v793, 0.5
        %v870 = vmul.f32 %v797, 0.5
        %v871 = vmul.f32 %v803, 0.5
        %v872 = vmul.f32 %v807, 0.5
        %v873 = vmul.f32 %v813, 0.5
        %v874 = vmul.f32 %v817, 0.5
        %v875 = vmul.f32 %v823, 0.5
        %v876 = vmul.f32 %v827, 0.5
        %v877 = vmul.f32 %v833, 0.5
        %v878 = vmul.f32 %v837, 0.5
        %v879 = vmul.f32 %v843, 0.5
        %v880 = vmul.f32 %v847, 0.5
        %v881 = vmul.f32 %v853, 0.5
        %v882 = vmul.f32 %v857, 0.5
        %v883 = vmul.f32 %v863, 0.5
        %v884 = vmul.f32 %v867, 0.5
        %v885 = vmul.f32 %v869, 1.442695
        %v886 = vpow.pop %v885
        %v887 = vmul.f32 %v870, 1.442695
        %v888 = vpow.pop %v887
        %v889 = vmul.f32 %v871, 1.442695
        %v890 = vpow.pop %v889
        %v891 = vmul.f32 %v872, 1.442695
        %v892 = vpow.pop %v891
        %v893 = vmul.f32 %v873, 1.442695
        %v894 = vpow.pop %v893
        %v895 = vmul.f32 %v874, 1.442695
        %v896 = vpow.pop %v895
        %v897 = vmul.f32 %v875, 1.442695
        %v898 = vpow.pop %v897
        %v899 = vmul.f32 %v876, 1.442695
        %v900 = vpow.pop %v899
        %v901 = vmul.f32 %v877, 1.442695
        %v902 = vpow.pop %v901
        %v903 = vmul.f32 %v878, 1.442695
        %v904 = vpow.pop %v903
        %v905 = vmul.f32 %v879, 1.442695
        %v906 = vpow.pop %v905
        %v907 = vmul.f32 %v880, 1.442695
        %v908 = vpow.pop %v907
        %v909 = vmul.f32 %v881, 1.442695
        %v910 = vpow.pop %v909
        %v911 = vmul.f32 %v882, 1.442695
        %v912 = vpow.pop %v911
        %v913 = vmul.f32 %v883, 1.442695
        %v914 = vpow.pop %v913
        %v915 = vmul.f32 %v884, 1.442695
        %v916 = vpow.pop %v915
        %v917 = vld [vmem:[%s394] sm:$0xf]
        %v918 = vld [vmem:[%s394 + $0x4] sm:$0xf]
        %v919 = vld [vmem:[%s394 + $0x8] sm:$0xf]
        %v920 = vld [vmem:[%s394 + $0xc] sm:$0xf]
        %v921 = vld [vmem:[%s394 + $0x10] sm:$0xf]
        %v922 = vld [vmem:[%s394 + $0x14] sm:$0xf]
        %v923 = vld [vmem:[%s394 + $0x18] sm:$0xf]
        %v924 = vld [vmem:[%s394 + $0x1c] sm:$0xf]
        %v925 = vld [vmem:[%s394 + $0x20] sm:$0xf]
        %v926 = vld [vmem:[%s394 + $0x24] sm:$0xf]
        %v927 = vld [vmem:[%s394 + $0x28] sm:$0xf]
        %v928 = vld [vmem:[%s394 + $0x2c] sm:$0xf]
        %v929 = vld [vmem:[%s394 + $0x30] sm:$0xf]
        %v930 = vld [vmem:[%s394 + $0x34] sm:$0xf]
        %v931 = vld [vmem:[%s394 + $0x38] sm:$0xf]
        %v932 = vld [vmem:[%s394 + $0x3c] sm:$0xf]
        %v933 = vunpack.c.l.bf16 %v917
        %v934 = vunpack.c.l.bf16 %v918
        %v935 = vunpack.c.l.bf16 %v919
        %v936 = vunpack.c.l.bf16 %v920
        %v937 = vunpack.c.l.bf16 %v921
        %v938 = vunpack.c.l.bf16 %v922
        %v939 = vunpack.c.l.bf16 %v923
        %v940 = vunpack.c.l.bf16 %v924
        %v941 = vunpack.c.l.bf16 %v925
        %v942 = vunpack.c.l.bf16 %v926
        %v943 = vunpack.c.l.bf16 %v927
        %v944 = vunpack.c.l.bf16 %v928
        %v945 = vunpack.c.l.bf16 %v929
        %v946 = vunpack.c.l.bf16 %v930
        %v947 = vunpack.c.l.bf16 %v931
        %v948 = vunpack.c.l.bf16 %v932
        %v949 = vmul.f32 %v933, %v886
        %v950 = vmul.f32 %v934, %v888
        %v951 = vmul.f32 %v935, %v890
        %v952 = vmul.f32 %v936, %v892
        %v953 = vmul.f32 %v937, %v894
        %v954 = vmul.f32 %v938, %v896
        %v955 = vmul.f32 %v939, %v898
        %v956 = vmul.f32 %v940, %v900
        %v957 = vmul.f32 %v941, %v902
        %v958 = vmul.f32 %v942, %v904
        %v959 = vmul.f32 %v943, %v906
        %v960 = vmul.f32 %v944, %v908
        %v961 = vmul.f32 %v945, %v910
        %v962 = vmul.f32 %v946, %v912
        %v963 = vmul.f32 %v947, %v914
        %v964 = vmul.f32 %v948, %v916
        %v965 = vadd.f32 %v949, %v791
        %v966 = vadd.f32 %v950, %v795
        %v967 = vadd.f32 %v951, %v801
        %v968 = vadd.f32 %v952, %v805
        %v969 = vadd.f32 %v953, %v811
        %v970 = vadd.f32 %v954, %v815
        %v971 = vadd.f32 %v955, %v821
        %v972 = vadd.f32 %v956, %v825
        %v973 = vadd.f32 %v957, %v831
        %v974 = vadd.f32 %v958, %v835
        %v975 = vadd.f32 %v959, %v841
        %v976 = vadd.f32 %v960, %v845
        %v977 = vadd.f32 %v961, %v851
        %v978 = vadd.f32 %v962, %v855
        %v979 = vadd.f32 %v963, %v861
        %v980 = vadd.f32 %v964, %v865
        %v981 = vpack.c.bf16 %v966, %v965
        %v982 = vpack.c.bf16 %v968, %v967
        %v983 = vpack.c.bf16 %v970, %v969
        %v984 = vpack.c.bf16 %v972, %v971
        %v985 = vpack.c.bf16 %v974, %v973
        %v986 = vpack.c.bf16 %v976, %v975
        %v987 = vpack.c.bf16 %v978, %v977
        %v988 = vpack.c.bf16 %v980, %v979
        %v989 = vld [vmem:[#allocation7] sm:$0xf]
        %v990 = vld [vmem:[#allocation7 + $0x4] sm:$0xf]
        %v991 = vld [vmem:[#allocation7 + $0x8] sm:$0xf]
        %v992 = vld [vmem:[#allocation7 + $0xc] sm:$0xf]
        %v993 = vld [vmem:[#allocation7 + $0x10] sm:$0xf]
        %v994 = vld [vmem:[#allocation7 + $0x14] sm:$0xf]
        %v995 = vld [vmem:[#allocation7 + $0x18] sm:$0xf]
        %v996 = vld [vmem:[#allocation7 + $0x1c] sm:$0xf]
        %v997 = vld [vmem:[#allocation7 + $0x20] sm:$0xf]
        %v998 = vld [vmem:[#allocation7 + $0x24] sm:$0xf]
        %v999 = vld [vmem:[#allocation7 + $0x28] sm:$0xf]
        %v1000 = vld [vmem:[#allocation7 + $0x2c] sm:$0xf]
        %v1001 = vld [vmem:[#allocation7 + $0x30] sm:$0xf]
        %v1002 = vld [vmem:[#allocation7 + $0x34] sm:$0xf]
        %v1003 = vld [vmem:[#allocation7 + $0x38] sm:$0xf]
        %v1004 = vld [vmem:[#allocation7 + $0x3c] sm:$0xf]
        %v1005 = vld [vmem:[%s4] sm:$0x1]
        %v1007 = vlaneseq
        %v1008 = vshrl.u32 %v1007, 7
        %v1009 = vsub.s32 0, %v1008
        %v1010 = vrot.slane %v1005, %v1009
        %v1028 = vunpack.c.l.b16 %v989
        %v1029 = vunpack.c.l.b16 %v990
        %v1030 = vunpack.c.l.b16 %v991
        %v1031 = vunpack.c.l.b16 %v992
        %v1032 = vunpack.c.l.b16 %v993
        %v1033 = vunpack.c.l.b16 %v994
        %v1034 = vunpack.c.l.b16 %v995
        %v1035 = vunpack.c.l.b16 %v996
        %v1036 = vunpack.c.l.b16 %v997
        %v1037 = vunpack.c.l.b16 %v998
        %v1038 = vunpack.c.l.b16 %v999
        %v1039 = vunpack.c.l.b16 %v1000
        %v1040 = vunpack.c.l.b16 %v1001
        %v1041 = vunpack.c.l.b16 %v1002
        %v1042 = vunpack.c.l.b16 %v1003
        %v1043 = vunpack.c.l.b16 %v1004
        %v1044 = vpack.c.b16 %v1029, %v1028
        %v1045 = vpack.c.b16 %v1031, %v1030
        %v1046 = vpack.c.b16 %v1033, %v1032
        %v1047 = vpack.c.b16 %v1035, %v1034
        %v1048 = vpack.c.b16 %v1037, %v1036
        %v1049 = vpack.c.b16 %v1039, %v1038
        %v1050 = vpack.c.b16 %v1041, %v1040
        %v1051 = vpack.c.b16 %v1043, %v1042
        %1060 = vmatprep.subr.bf16.mxu0 0
        %1061 = vmatpush1.bf16.msra.mxu0 %v1044
        %1062 = vmatprep.subr.bf16.mxu0 0
        %1063 = vmatpush1.bf16.msra.mxu0 %v1045
        %1064 = vmatprep.subr.bf16.mxu0 0
        %1065 = vmatpush1.bf16.msra.mxu0 %v1046
        %1066 = vmatprep.subr.bf16.mxu0 0
        %1067 = vmatpush1.bf16.msra.mxu0 %v1047
        %1068 = vmatprep.subr.bf16.mxu0 0
        %1069 = vmatpush1.bf16.msra.mxu0 %v1048
        %1070 = vmatprep.subr.bf16.mxu0 0
        %1071 = vmatpush1.bf16.msra.mxu0 %v1049
        %1072 = vmatprep.subr.bf16.mxu0 0
        %1073 = vmatpush1.bf16.msra.mxu0 %v1050
        %1074 = vmatprep.subr.bf16.mxu0 0
        %1075 = vmatpush1.bf16.msra.mxu0 %v1051
        %1076 = vmatprep.subr.bf16.mxu0 0
        %1077 = vmatpush1.bf16.msra.mxu0 0
        %1078 = vmatprep.subr.bf16.mxu0 0
        %1079 = vmatpush1.bf16.msra.mxu0 0
        %1080 = vmatprep.subr.bf16.mxu0 0
        %1081 = vmatpush1.bf16.msra.mxu0 0
        %1082 = vmatprep.subr.bf16.mxu0 0
        %1083 = vmatpush1.bf16.msra.mxu0 0
        %1084 = vmatprep.subr.bf16.mxu0 0
        %1085 = vmatpush1.bf16.msra.mxu0 0
        %1086 = vmatprep.subr.bf16.mxu0 0
        %1087 = vmatpush1.bf16.msra.mxu0 0
        %1088 = vmatprep.subr.bf16.mxu0 0
        %1089 = vmatpush1.bf16.msra.mxu0 0
        %1090 = vmatprep.subr.bf16.mxu0 0
        %1091 = vmatpush1.bf16.msra.mxu0 0
        %1092 = vmatprep.mubr.bf16.mxu0 0
        %1093 = vmatmul.mubr.bf16.gmra.mrb[0].mxu0 %v981
        %v1094 = vpop.f32.mrb[0].mxu0
        %v1095 = vadd.f32 %v1010, %v1094
        %v1096 = vpop.f32.mrb[0].mxu0
        %v1097 = vpop.f32.mrb[0].mxu0
        %v1098 = vadd.f32 %v1010, %v1097
        %v1099 = vpop.f32.mrb[0].mxu0
        %1100 = vmatprep.mubr.bf16.mxu0 0
        %1101 = vmatmul.mubr.bf16.gmra.mrb[0].mxu0 %v982
        %v1102 = vpop.f32.mrb[0].mxu0
        %v1103 = vadd.f32 %v1010, %v1102
        %v1104 = vpop.f32.mrb[0].mxu0
        %v1105 = vpop.f32.mrb[0].mxu0
        %v1106 = vadd.f32 %v1010, %v1105
        %v1107 = vpop.f32.mrb[0].mxu0
        %1108 = vmatprep.mubr.bf16.mxu0 0
        %1109 = vmatmul.mubr.bf16.gmra.mrb[0].mxu0 %v983
        %v1110 = vpop.f32.mrb[0].mxu0
        %v1111 = vadd.f32 %v1010, %v1110
        %v1112 = vpop.f32.mrb[0].mxu0
        %v1113 = vpop.f32.mrb[0].mxu0
        %v1114 = vadd.f32 %v1010, %v1113
        %v1115 = vpop.f32.mrb[0].mxu0
        %1116 = vmatprep.mubr.bf16.mxu0 0
        %1117 = vmatmul.mubr.bf16.gmra.mrb[0].mxu0 %v984
        %v1118 = vpop.f32.mrb[0].mxu0
        %v1119 = vadd.f32 %v1010, %v1118
        %v1120 = vpop.f32.mrb[0].mxu0
        %v1121 = vpop.f32.mrb[0].mxu0
        %v1122 = vadd.f32 %v1010, %v1121
        %v1123 = vpop.f32.mrb[0].mxu0
        %1124 = vmatprep.mubr.bf16.mxu0 0
        %1125 = vmatmul.mubr.bf16.gmra.mrb[0].mxu0 %v985
        %v1126 = vpop.f32.mrb[0].mxu0
        %v1127 = vadd.f32 %v1010, %v1126
        %v1128 = vpop.f32.mrb[0].mxu0
        %v1129 = vpop.f32.mrb[0].mxu0
        %v1130 = vadd.f32 %v1010, %v1129
        %v1131 = vpop.f32.mrb[0].mxu0
        %1132 = vmatprep.mubr.bf16.mxu0 0
        %1133 = vmatmul.mubr.bf16.gmra.mrb[0].mxu0 %v986
        %v1134 = vpop.f32.mrb[0].mxu0
        %v1135 = vadd.f32 %v1010, %v1134
        %v1136 = vpop.f32.mrb[0].mxu0
        %v1137 = vpop.f32.mrb[0].mxu0
        %v1138 = vadd.f32 %v1010, %v1137
        %v1139 = vpop.f32.mrb[0].mxu0
        %1140 = vmatprep.mubr.bf16.mxu0 0
        %1141 = vmatmul.mubr.bf16.gmra.mrb[0].mxu0 %v987
        %v1142 = vpop.f32.mrb[0].mxu0
        %v1143 = vadd.f32 %v1010, %v1142
        %v1144 = vpop.f32.mrb[0].mxu0
        %v1145 = vpop.f32.mrb[0].mxu0
        %v1146 = vadd.f32 %v1010, %v1145
        %v1147 = vpop.f32.mrb[0].mxu0
        %1148 = vmatprep.mubr.bf16.mxu0 0
        %1149 = vmatmul.mubr.bf16.gmra.mrb[0].mxu0 %v988
        %v1150 = vpop.f32.mrb[0].mxu0
        %v1151 = vadd.f32 %v1010, %v1150
        %v1152 = vpop.f32.mrb[0].mxu0
        %v1153 = vpop.f32.mrb[0].mxu0
        %v1154 = vadd.f32 %v1010, %v1153
        %v1155 = vpop.f32.mrb[0].mxu0
        %1156 = vdwg.mxu0
        %1157 = vst [vmem:[%s434] sm:$0xff] %v791
        %1158 = vst [vmem:[%s434 + $0x8] sm:$0xff] %v795
        %1159 = vst [vmem:[%s434 + $0x10] sm:$0xff] %v801
        %1160 = vst [vmem:[%s434 + $0x18] sm:$0xff] %v805
        %1161 = vst [vmem:[%s434 + $0x20] sm:$0xff] %v811
        %1162 = vst [vmem:[%s434 + $0x28] sm:$0xff] %v815
        %1163 = vst [vmem:[%s434 + $0x30] sm:$0xff] %v821
        %1164 = vst [vmem:[%s434 + $0x38] sm:$0xff] %v825
        %1165 = vst [vmem:[%s434 + $0x40] sm:$0xff] %v831
        %1166 = vst [vmem:[%s434 + $0x48] sm:$0xff] %v835
        %1167 = vst [vmem:[%s434 + $0x50] sm:$0xff] %v841
        %1168 = vst [vmem:[%s434 + $0x58] sm:$0xff] %v845
        %1169 = vst [vmem:[%s434 + $0x60] sm:$0xff] %v851
        %1170 = vst [vmem:[%s434 + $0x68] sm:$0xff] %v855
        %1171 = vst [vmem:[%s434 + $0x70] sm:$0xff] %v861
        %1172 = vst [vmem:[%s434 + $0x78] sm:$0xff] %v865
        %1173 = vst [vmem:[%s441] sm:$0xff] %v793
        %1174 = vst [vmem:[%s441 + $0x8] sm:$0xff] %v797
        %1175 = vst [vmem:[%s441 + $0x10] sm:$0xff] %v803
        %1176 = vst [vmem:[%s441 + $0x18] sm:$0xff] %v807
        %1177 = vst [vmem:[%s441 + $0x20] sm:$0xff] %v813
        %1178 = vst [vmem:[%s441 + $0x28] sm:$0xff] %v817
        %1179 = vst [vmem:[%s441 + $0x30] sm:$0xff] %v823
        %1180 = vst [vmem:[%s441 + $0x38] sm:$0xff] %v827
        %1181 = vst [vmem:[%s441 + $0x40] sm:$0xff] %v833
        %1182 = vst [vmem:[%s441 + $0x48] sm:$0xff] %v837
        %1183 = vst [vmem:[%s441 + $0x50] sm:$0xff] %v843
        %1184 = vst [vmem:[%s441 + $0x58] sm:$0xff] %v847
        %1185 = vst [vmem:[%s441 + $0x60] sm:$0xff] %v853
        %1186 = vst [vmem:[%s441 + $0x68] sm:$0xff] %v857
        %1187 = vst [vmem:[%s441 + $0x70] sm:$0xff] %v863
        %1188 = vst [vmem:[%s441 + $0x78] sm:$0xff] %v867
        %1189 = vst [vmem:[%s448] sm:$0xff] %v965
        %1190 = vst [vmem:[%s448 + $0x8] sm:$0xff] %v966
        %1191 = vst [vmem:[%s448 + $0x10] sm:$0xff] %v967
        %1192 = vst [vmem:[%s448 + $0x18] sm:$0xff] %v968
        %1193 = vst [vmem:[%s448 + $0x20] sm:$0xff] %v969
        %1194 = vst [vmem:[%s448 + $0x28] sm:$0xff] %v970
        %1195 = vst [vmem:[%s448 + $0x30] sm:$0xff] %v971
        %1196 = vst [vmem:[%s448 + $0x38] sm:$0xff] %v972
        %1197 = vst [vmem:[%s448 + $0x40] sm:$0xff] %v973
        %1198 = vst [vmem:[%s448 + $0x48] sm:$0xff] %v974
        %1199 = vst [vmem:[%s448 + $0x50] sm:$0xff] %v975
        %1200 = vst [vmem:[%s448 + $0x58] sm:$0xff] %v976
        %1201 = vst [vmem:[%s448 + $0x60] sm:$0xff] %v977
        %1202 = vst [vmem:[%s448 + $0x68] sm:$0xff] %v978
        %1203 = vst [vmem:[%s448 + $0x70] sm:$0xff] %v979
        %1204 = vst [vmem:[%s448 + $0x78] sm:$0xff] %v980
        %1205 = vst [vmem:[%s427] sm:$0xff] %v1095
        %1206 = vst [vmem:[%s427 + $0x8] sm:$0xff] %v1098
        %1207 = vst [vmem:[%s427 + $0x10] sm:$0xff] %v1103
        %1208 = vst [vmem:[%s427 + $0x18] sm:$0xff] %v1106
        %1209 = vst [vmem:[%s427 + $0x20] sm:$0xff] %v1111
        %1210 = vst [vmem:[%s427 + $0x28] sm:$0xff] %v1114
        %1211 = vst [vmem:[%s427 + $0x30] sm:$0xff] %v1119
        %1212 = vst [vmem:[%s427 + $0x38] sm:$0xff] %v1122
        %1213 = vst [vmem:[%s427 + $0x40] sm:$0xff] %v1127
        %1214 = vst [vmem:[%s427 + $0x48] sm:$0xff] %v1130
        %1215 = vst [vmem:[%s427 + $0x50] sm:$0xff] %v1135
        %1216 = vst [vmem:[%s427 + $0x58] sm:$0xff] %v1138
        %1217 = vst [vmem:[%s427 + $0x60] sm:$0xff] %v1143
        %1218 = vst [vmem:[%s427 + $0x68] sm:$0xff] %v1146
        %1219 = vst [vmem:[%s427 + $0x70] sm:$0xff] %v1151
        %1220 = vst [vmem:[%s427 + $0x78] sm:$0xff] %v1154
        %s1221 = sand.u32 %s181, 1
        %s1222 = scalar_lea.sflag [#allocation4], %s1221
        %s1223 = sand.u32 %s181, 1
        %s1224 = smul.addr %s1223, 128
        %s1225 = scalar_lea.vmem [#allocation10], %s1224
        %s1226 = sand.u32 %s37, 1
        %s1227 = scalar_lea.sflag [#allocation12], %s1226
        %s1228 = sand.u32 %s207, 1
        %s1229 = smul.addr %s1228, 128
        %s1230 = scalar_lea.vmem [#allocation11], %s1229
        %s1231 = sand.u32 %s37, 1
        %s1232 = scalar_lea.sflag [#allocation12], %s1231
        %s1233 = sand.u32 %s233, 1
        %s1234 = smul.addr %s1233, 128
        %s1235 = scalar_lea.vmem [#allocation13], %s1234
        %s1236 = sand.u32 %s259, 1
        %s1237 = scalar_lea.sflag [#allocation15], %s1236
        %s1238 = sand.u32 %s259, 1
        %s1239 = smul.addr %s1238, 128
        %s1240 = scalar_lea.vmem [#allocation14], %s1239
        // Predicated region
        $region61: #{tpu_custom_call.1} parent=43 // pred_check
          %p1241 = pneg %p191
        $region62: #{tpu_custom_call.1} parent=43 // pred_check_branch
          %1243 = sbr.rel (%p1241) target = $region64
        $region63: #{tpu_custom_call.1} parent=43 // pred_region
          %s1244 = smul.u32 16, %s37
          %s1246 = ssub.s32 2048, 2048
          %1247 = vsyncadd %s1222, %s1246
          %s1248 = smul.addr %s1244, 128
          %s1249 = scalar_lea.hbm %s6, %s1248
          %s1250 = sshll.u32 %s1225, 4
          %s1251 = int_to_ptr.vmem [resolvable:$true] %s1250
          %1256 = dma.vmem_to_hbm [thread:$0]  %s1251, 2048, %s1249, %s1222, 128, 128, 8
        $region64: #{tpu_custom_call.1} parent=43 // pred_fallthru
          _
        // Predicated region
        $region65: #{tpu_custom_call.1} parent=43 // pred_check
          %p1257 = pneg %p217
        $region66: #{tpu_custom_call.1} parent=43 // pred_check_branch
          %1259 = sbr.rel (%p1257) target = $region68
        $region67: #{tpu_custom_call.1} parent=43 // pred_region
          %s1260 = smul.u32 16, %s37
          %s1262 = ssub.s32 2048, 2048
          %1263 = vsyncadd %s1227, %s1262
          %s1264 = smul.addr %s1260, 128
          %s1265 = scalar_lea.hbm %s7, %s1264
          %s1266 = sshll.u32 %s1230, 4
          %s1267 = int_to_ptr.vmem [resolvable:$true] %s1266
          %1272 = dma.vmem_to_hbm [thread:$0]  %s1267, 2048, %s1265, %s1227, 128, 128, 8
        $region68: #{tpu_custom_call.1} parent=43 // pred_fallthru
          _
        // Predicated region
        $region69: #{tpu_custom_call.1} parent=43 // pred_check
          %p1273 = pneg %p243
        $region70: #{tpu_custom_call.1} parent=43 // pred_check_branch
          %1275 = sbr.rel (%p1273) target = $region72
        $region71: #{tpu_custom_call.1} parent=43 // pred_region
          %s1276 = smul.u32 16, %s37
          %s1278 = ssub.s32 2048, 2048
          %1279 = vsyncadd %s1232, %s1278
          %s1280 = smul.addr %s1276, 128
          %s1281 = scalar_lea.hbm %s8, %s1280
          %s1282 = sshll.u32 %s1235, 4
          %s1283 = int_to_ptr.vmem [resolvable:$true] %s1282
          %1288 = dma.vmem_to_hbm [thread:$0]  %s1283, 2048, %s1281, %s1232, 128, 128, 8
        $region72: #{tpu_custom_call.1} parent=43 // pred_fallthru
          _
        // Predicated region
        $region73: #{tpu_custom_call.1} parent=43 // pred_check
          %p1289 = pneg %p269
        $region74: #{tpu_custom_call.1} parent=43 // pred_check_branch
          %1291 = sbr.rel (%p1289) target = $region76
        $region75: #{tpu_custom_call.1} parent=43 // pred_region
          %s1292 = smul.u32 16, %s37
          %s1294 = ssub.s32 2048, 2048
          %1295 = vsyncadd %s1237, %s1294
          %s1296 = smul.addr %s1292, 128
          %s1297 = scalar_lea.hbm %s9, %s1296
          %s1298 = sshll.u32 %s1240, 4
          %s1299 = int_to_ptr.vmem [resolvable:$true] %s1298
          %1304 = dma.vmem_to_hbm [thread:$0]  %s1299, 2048, %s1297, %s1237, 128, 128, 8
        $region76: #{tpu_custom_call.1} parent=43 // pred_fallthru
          _
      $region44: #{tpu_custom_call.1} parent=5 // pred_fallthru
        _
      %p1305 = scmp.le.s32.totalorder 2, %s32
      // Predicated region
      $region77: #{tpu_custom_call.1} parent=5 // pred_check
        %p1306 = pneg %p1305
      $region78: #{tpu_custom_call.1} parent=5 // pred_check_branch
        %1308 = sbr.rel (%p1306) target = $region80
      $region79: #{tpu_custom_call.1} parent=5 // pred_region
        %s1309 = ssub.s32 %s32, 2
        // Predicated region
        $region81: #{tpu_custom_call.1} parent=79 // pred_check
          %p1310 = pneg %p197
        $region82: #{tpu_custom_call.1} parent=79 // pred_check_branch
          %1312 = sbr.rel (%p1310) target = $region84
        $region83: #{tpu_custom_call.1} parent=79 // pred_region
          %s1313 = sand.u32 %s182, 1
          %s1314 = scalar_lea.sflag [#allocation4], %s1313
          %s1315 = sand.u32 %s182, 1
          %s1316 = smul.addr %s1315, 128
          %s1317 = scalar_lea.vmem [#allocation10], %s1316
          %1318 = dma.done %s1314, 2048
        $region84: #{tpu_custom_call.1} parent=79 // pred_fallthru
          _
        // Predicated region
        $region85: #{tpu_custom_call.1} parent=79 // pred_check
          %p1319 = pneg %p223
        $region86: #{tpu_custom_call.1} parent=79 // pred_check_branch
          %1321 = sbr.rel (%p1319) target = $region88
        $region87: #{tpu_custom_call.1} parent=79 // pred_region
          %s1322 = sand.u32 %s38, 1
          %s1323 = scalar_lea.sflag [#allocation12], %s1322
          %s1324 = sand.u32 %s208, 1
          %s1325 = smul.addr %s1324, 128
          %s1326 = scalar_lea.vmem [#allocation11], %s1325
          %1327 = dma.done %s1323, 2048
        $region88: #{tpu_custom_call.1} parent=79 // pred_fallthru
          _
        // Predicated region
        $region89: #{tpu_custom_call.1} parent=79 // pred_check
          %p1328 = pneg %p249
        $region90: #{tpu_custom_call.1} parent=79 // pred_check_branch
          %1330 = sbr.rel (%p1328) target = $region92
        $region91: #{tpu_custom_call.1} parent=79 // pred_region
          %s1331 = sand.u32 %s38, 1
          %s1332 = scalar_lea.sflag [#allocation12], %s1331
          %s1333 = sand.u32 %s234, 1
          %s1334 = smul.addr %s1333, 128
          %s1335 = scalar_lea.vmem [#allocation13], %s1334
          %1336 = dma.done %s1332, 2048
        $region92: #{tpu_custom_call.1} parent=79 // pred_fallthru
          _
        // Predicated region
        $region93: #{tpu_custom_call.1} parent=79 // pred_check
          %p1337 = pneg %p275
        $region94: #{tpu_custom_call.1} parent=79 // pred_check_branch
          %1339 = sbr.rel (%p1337) target = $region96
        $region95: #{tpu_custom_call.1} parent=79 // pred_region
          %s1340 = sand.u32 %s260, 1
          %s1341 = scalar_lea.sflag [#allocation15], %s1340
          %s1342 = sand.u32 %s260, 1
          %s1343 = smul.addr %s1342, 128
          %s1344 = scalar_lea.vmem [#allocation14], %s1343
          %1345 = dma.done %s1341, 2048
        $region96: #{tpu_custom_call.1} parent=79 // pred_fallthru
          _
      $region80: #{tpu_custom_call.1} parent=5 // pred_fallthru
        _
    $region6: #{tpu_custom_call.1} parent=1 // loop_footer
      %s36 = sadd.s32 1, %s32
    $region7: #{tpu_custom_call.1} parent=1 // loop_footer_branch
      %31 = sbr.rel target = $region3
    $region8: #{tpu_custom_call.1} parent=1 // loop_exit
      _
    %1346 = vsyncpa [#allocation3], 1
    %s1347 = scalar_lea.sflag [#allocation3], 1
    %1348 = vsyncpa %s1347, 1
    %1349 = vsyncpa [#allocation6], 1
    %1350 = vsyncpa [#allocation9], 1
    %s1351 = scalar_lea.sflag [#allocation9], 1
    %1352 = vsyncpa %s1351, 1
    %1353 = vsyncpa [#allocation4], 1
    %s1354 = scalar_lea.sflag [#allocation4], 1
    %1355 = vsyncpa %s1354, 1
    %1356 = vsyncpa [#allocation12], 1
    %s1357 = scalar_lea.sflag [#allocation12], 1
    %1358 = vsyncpa %s1357, 1
    %1359 = vsyncpa [#allocation15], 1
    %s1360 = scalar_lea.sflag [#allocation15], 1
    %1361 = vsyncpa %s1360, 1

</llo_original>
